<compile_context>
chip_gen: v7x
topology: tpu7x:2x2x1
jax: 0.10.0
libtpu: 0.0.40
codegen_flags: <defaults>
</compile_context>

<pallas_src>
import numpy as np
import jax
import jax.numpy as jnp
from jax.experimental import pallas as pl
from jax.experimental.pallas import tpu as pltpu


def _cdiv(a, b):
    return -(-a // b)


# ---------------------------------------------------------------------------
# Kernels
# ---------------------------------------------------------------------------
def _weighted_sum_kernel(w_ref, *refs):
    """w_ref: (n-1,) f32 scalars in SMEM (already sigmoid(w)*2, scalar-prefetched)."""
    x_refs, o_ref = refs[:-1], refs[-1]
    x0 = x_refs[0][...]
    # Compute in the input dtype for floats (matches the unweighted path and
    # keeps bf16 chains in bf16); promote to f32 for integer inputs so the
    # float weights behave like PyTorch type promotion.
    cdtype = x0.dtype if jnp.issubdtype(x0.dtype, jnp.floating) else jnp.float32
    acc = x0.astype(cdtype)
    for i in range(1, len(x_refs)):
        acc = acc + x_refs[i][...].astype(cdtype) * w_ref[i - 1].astype(cdtype)
    o_ref[...] = acc.astype(o_ref.dtype)


def _plain_sum_kernel(*refs):
    x_refs, o_ref = refs[:-1], refs[-1]
    acc = x_refs[0][...]
    for xr in x_refs[1:]:
        acc = acc + xr[...]
    o_ref[...] = acc.astype(o_ref.dtype)


# ---------------------------------------------------------------------------
# Planning
# ---------------------------------------------------------------------------
_SUBLANE_PACK = {4: 8, 2: 16, 1: 32}     # rows per packed sublane group
_LANE_CANDIDATES = (2048, 1024, 512, 256, 128)
_MIN_GRID_STEPS = 4                      # even: balances v7x's 2 TCs; cheap on 1-TC chips
_CHIP_PLAN = None


def _chip_plan():
    """Return (vmem_budget_bytes, vmem_limit_bytes), generation-aware."""
    global _CHIP_PLAN
    if _CHIP_PLAN is not None:
        return _CHIP_PLAN
    phys = None
    try:
        phys = int(pltpu.get_tpu_info().vmem_capacity_bytes)
    except Exception:
        phys = None
    if phys is None:
        try:
            kind = jax.devices()[0].device_kind.lower()
            phys = (64 if "v7" in kind else 128) * 1024 * 1024
        except Exception:
            phys = 64 * 1024 * 1024
    if phys >= 96 * 1024 * 1024:
        # v5e / v6e: 128 MiB physical VMEM; the 16/32 MiB scoped default is
        # only a software default, so raise it explicitly.
        _CHIP_PLAN = (48 * 1024 * 1024, 64 * 1024 * 1024)
    else:
        # v7x: 64 MiB physical per TensorCore; stay well inside it.
        _CHIP_PLAN = (24 * 1024 * 1024, 32 * 1024 * 1024)
    return _CHIP_PLAN


def _plan_layout(total, itemsize, n_inputs, vmem_budget):
    """`total` is a multiple of 128.  Return (lane_w, tile_rows, rows)."""
    sublane = _SUBLANE_PACK.get(itemsize, 8)

    lane_w = 128
    for cand in _LANE_CANDIDATES:
        if total % cand == 0 and total // cand >= sublane:
            lane_w = cand
            break
    rows = total // lane_w
    if rows <= sublane:
        return lane_w, rows, rows                    # single full-array block

    # Per-operand block row cap: double-buffered (n inputs + 1 output) blocks
    # must fit the generation-aware budget.
    block_budget = vmem_budget // (2 * (n_inputs + 1))
    tr_budget = max(sublane,
                    (block_budget // (lane_w * itemsize)) // sublane * sublane)
    # Keep >= _MIN_GRID_STEPS steps when there is enough data.
    tr_balanced = max(sublane,
                      _cdiv(_cdiv(rows, _MIN_GRID_STEPS), sublane) * sublane)
    tr_cap = min(tr_budget, tr_balanced)

    # Prefer a tile that divides rows exactly (no partial trailing block), but
    # never shrink below half the cap just to get an exact divide.
    tile_rows = tr_cap
    floor = max(sublane, (tr_cap // 2 // sublane) * sublane)
    for tr in range(tr_cap, floor - 1, -sublane):
        if rows % tr == 0:
            tile_rows = tr
            break
    return lane_w, tile_rows, rows


def _xla_combine(parts, ws, out_dtype):
    """Reference-semantics combine for tiny tensors / the <128-element tail."""
    if ws is not None:
        acc = parts[0].astype(out_dtype)
        for i in range(1, len(parts)):
            acc = acc + parts[i].astype(out_dtype) * ws[i - 1].astype(out_dtype)
    else:
        acc = parts[0]
        for p in parts[1:]:
            acc = acc + p
    return acc.astype(out_dtype)


# ---------------------------------------------------------------------------
# Forward
# ---------------------------------------------------------------------------
def sum_forward(xs, w=None):
    """Pallas equivalent of Sum.forward.

    xs : list of n arrays, identical shape and dtype.
    w  : optional raw parameter array of shape (n-1,) (the nn.Parameter);
         sigmoid(w)*2 is applied (precomputed once, scalars only).
    """
    n = len(xs)
    orig_shape = xs[0].shape
    dtype = xs[0].dtype
    total = int(np.prod(orig_shape))
    itemsize = int(np.dtype(dtype).itemsize)

    if w is not None:
        ws = jax.nn.sigmoid(w.astype(jnp.float32)) * 2.0          # (n-1,) f32
        out_dtype = dtype if jnp.issubdtype(dtype, jnp.floating) else jnp.float32
    else:
        ws = None
        out_dtype = dtype

    if n == 1:
        return xs[0].astype(out_dtype)

    main = (total // 128) * 128
    tail = total - main

    if main == 0:
        # Fewer than 128 elements: the sum itself is ~free in XLA.
        return _xla_combine(xs, ws, out_dtype).reshape(orig_shape)

    flats = [x.reshape(total) for x in xs]
    if tail:
        mains = [f[:main] for f in flats]
        tails = [f[main:] for f in flats]
    else:
        mains, tails = flats, None

    vmem_budget, vmem_limit = _chip_plan()
    lane_w, tile_rows, rows = _plan_layout(main, itemsize, n, vmem_budget)
    slabs = [m.reshape(rows, lane_w) for m in mains]

    grid = (_cdiv(rows, tile_rows),)
    cparams = pltpu.CompilerParams(
        dimension_semantics=("parallel",),
        vmem_limit_bytes=vmem_limit,
    )
    cost = pl.CostEstimate(
        flops=(2 * (n - 1) if ws is not None else (n - 1)) * main,
        transcendentals=0,
        bytes_accessed=(n + 1) * main * itemsize,
    )
    out_struct = jax.ShapeDtypeStruct((rows, lane_w), out_dtype)

    if ws is not None:
        # Scalar-prefetch the (n-1) weights into SMEM (idiomatic TPU pattern).
        x_spec = pl.BlockSpec((tile_rows, lane_w), lambda i, ws_ref: (i, 0))
        o_spec = pl.BlockSpec((tile_rows, lane_w), lambda i, ws_ref: (i, 0))
        grid_spec = pltpu.PrefetchScalarGridSpec(
            num_scalar_prefetch=1,
            grid=grid,
            in_specs=[x_spec] * n,
            out_specs=o_spec,
        )
        out = pl.pallas_call(
            _weighted_sum_kernel,
            out_shape=out_struct,
            grid_spec=grid_spec,
            compiler_params=cparams,
            cost_estimate=cost,
        )(ws, *slabs)
    else:
        x_spec = pl.BlockSpec((tile_rows, lane_w), lambda i: (i, 0))
        o_spec = pl.BlockSpec((tile_rows, lane_w), lambda i: (i, 0))
        out = pl.pallas_call(
            _plain_sum_kernel,
            out_shape=out_struct,
            grid=grid,
            in_specs=[x_spec] * n,
            out_specs=o_spec,
            compiler_params=cparams,
            cost_estimate=cost,
        )(*slabs)

    out_flat = out.reshape(main)
    if tail:
        tail_out = _xla_combine(tails, ws, out_dtype)
        out_flat = jnp.concatenate([out_flat, tail_out])
    return out_flat.reshape(orig_shape)


# ---------------------------------------------------------------------------
# Reference + tests
# ---------------------------------------------------------------------------
def _ref_sum(xs, w=None):
    y = xs[0]
    if w is not None:
        ws = jax.nn.sigmoid(w) * 2.0
        for i in range(len(xs) - 1):
            y = y + xs[i + 1] * ws[i]
    else:
        for i in range(len(xs) - 1):
            y = y + xs[i + 1]
    return y


if __name__ == "__main__":
    key = jax.random.PRNGKey(0)

    # --- weighted case: Sum(n=3, weight=True) -------------------------------
    n = 3
    B, C, H, W = 2, 4, 16, 16
    keys = jax.random.split(key, n)
    xs = [jax.random.normal(k, (B, C, H, W), dtype=jnp.float32) for k in keys]
    # deterministic parameter init, same as the module: -arange(1, n) / 2
    w_param = -jnp.arange(1.0, float(n), dtype=jnp.float32) / 2.0

    y_weighted = jax.block_until_ready(sum_forward(xs, w_param))
    assert y_weighted.shape == (B, C, H, W)
    np.testing.assert_allclose(np.asarray(y_weighted),
                               np.asarray(_ref_sum(xs, w_param)),
                               rtol=1e-5, atol=1e-5)

    # --- unweighted case: Sum(n=3, weight=False) ----------------------------
    y_plain = jax.block_until_ready(sum_forward(xs, None))
    np.testing.assert_allclose(np.asarray(y_plain),
                               np.asarray(_ref_sum(xs, None)),
                               rtol=1e-5, atol=1e-5)

    # --- awkward (non multiple-of-128) shape: prefix kernel + XLA tail ------
    keys2 = jax.random.split(jax.random.PRNGKey(1), 2)
    xs2 = [jax.random.normal(k, (2, 3, 10, 10), dtype=jnp.float32) for k in keys2]
    w2 = -jnp.arange(1.0, 2.0, dtype=jnp.float32) / 2.0
    y2 = jax.block_until_ready(sum_forward(xs2, w2))
    np.testing.assert_allclose(np.asarray(y2), np.asarray(_ref_sum(xs2, w2)),
                               rtol=1e-5, atol=1e-5)

    print("KERNEL_OK")
</pallas_src>

<mosaic_0001>
module attributes {stable_mosaic.version = 11 : i64} {
  func.func @_weighted_sum_kernel(%arg0: i32, %arg1: memref<2xf32, #tpu.memory_space<smem>>, %arg2: memref<8x256xf32, #tpu.memory_space<vmem>>, %arg3: memref<8x256xf32, #tpu.memory_space<vmem>>, %arg4: memref<8x256xf32, #tpu.memory_space<vmem>>, %arg5: memref<8x256xf32, #tpu.memory_space<vmem>>) attributes {dimension_semantics = [#tpu.dimension_semantics<parallel>], iteration_bounds = array<i64: 1>, scalar_prefetch = 1 : i64, scratch_operands = 0 : i64, tpu.core_type = #tpu.core_type<tc>, window_params = [{transform_indices = @transform_0, window_bounds = array<i64: 8, 256>}, {transform_indices = @transform_1, window_bounds = array<i64: 8, 256>}, {transform_indices = @transform_2, window_bounds = array<i64: 8, 256>}, {transform_indices = @transform_3, window_bounds = array<i64: 8, 256>}]} {
    %c0 = arith.constant 0 : index
    %c0_0 = arith.constant 0 : index
    %0 = vector.load %arg2[%c0, %c0_0] : memref<8x256xf32, #tpu.memory_space<vmem>>, vector<8x256xf32>
    %c0_1 = arith.constant 0 : index
    %c0_2 = arith.constant 0 : index
    %1 = vector.load %arg3[%c0_1, %c0_2] : memref<8x256xf32, #tpu.memory_space<vmem>>, vector<8x256xf32>
    %c0_3 = arith.constant 0 : index
    %2 = memref.load %arg1[%c0_3] : memref<2xf32, #tpu.memory_space<smem>>
    %3 = vector.broadcast %2 : f32 to vector<8x256xf32>
    %4 = arith.mulf %1, %3 : vector<8x256xf32>
    %5 = arith.addf %0, %4 : vector<8x256xf32>
    %c0_4 = arith.constant 0 : index
    %c0_5 = arith.constant 0 : index
    %6 = vector.load %arg4[%c0_4, %c0_5] : memref<8x256xf32, #tpu.memory_space<vmem>>, vector<8x256xf32>
    %c1 = arith.constant 1 : index
    %7 = memref.load %arg1[%c1] : memref<2xf32, #tpu.memory_space<smem>>
    %8 = vector.broadcast %7 : f32 to vector<8x256xf32>
    %9 = arith.mulf %6, %8 : vector<8x256xf32>
    %10 = arith.addf %5, %9 : vector<8x256xf32>
    %c0_6 = arith.constant 0 : index
    %c0_7 = arith.constant 0 : index
    %11 = vector.load %arg5[%c0_6, %c0_7] : memref<8x256xf32, #tpu.memory_space<vmem>>, vector<8x256xf32>
    tpu.vector_store %arg5[%c0_6, %c0_7], %10 {strides = array<i32>} : memref<8x256xf32, #tpu.memory_space<vmem>>, vector<8x256xf32>,
    return
  }
  func.func @transform_0(%arg0: i32, %arg1: memref<2xf32, #tpu.memory_space<smem>>) -> (i32, i32) {
    %c0_i32 = arith.constant 0 : i32
    %c0_i32_0 = arith.constant 0 : i32
    return %arg0, %c0_i32 : i32, i32
  }
  func.func @transform_1(%arg0: i32, %arg1: memref<2xf32, #tpu.memory_space<smem>>) -> (i32, i32) {
    %c0_i32 = arith.constant 0 : i32
    %c0_i32_0 = arith.constant 0 : i32
    return %arg0, %c0_i32 : i32, i32
  }
  func.func @transform_2(%arg0: i32, %arg1: memref<2xf32, #tpu.memory_space<smem>>) -> (i32, i32) {
    %c0_i32 = arith.constant 0 : i32
    %c0_i32_0 = arith.constant 0 : i32
    return %arg0, %c0_i32 : i32, i32
  }
  func.func @transform_3(%arg0: i32, %arg1: memref<2xf32, #tpu.memory_space<smem>>) -> (i32, i32) {
    %c0_i32 = arith.constant 0 : i32
    %c0_i32_0 = arith.constant 0 : i32
    return %arg0, %c0_i32 : i32, i32
  }
}

</mosaic_0001>

<llo_original>
// kernel: tpu_custom_call.1
$region0: #{tpu_custom_call.1}
  #allocation0 [shape = 'u32[]', space=smem, size = 0x4, offset = 0x4, fixed_abs, tag = 'smem constant byte address 0x4 - core index']
  #allocation1 [shape = 'u32[144,128]{1,0:T(1,128)}', space=vmem, size = 0x12000, scoped, tag = 'internal scratch']
  #allocation2 [shape = 's32[1]{0}', space=sflag, size = 0x4, scoped, tag = 'scoped memory for tpu_custom_call.1']
  #allocation3 [shape = 'u8[512]{0}', space=smem, size = 0x200, scoped, tag = 'prefetched SMEM operand 0']
  %s0 = inlined_call_operand.hbm [shape: f32[2], index: 0, kind: input, shape index: {}]
  %s1 = inlined_call_operand.hbm [shape: f32[8,256], index: 1, kind: input, shape index: {}]
  %s2 = inlined_call_operand.hbm [shape: f32[8,256], index: 2, kind: input, shape index: {}]
  %s3 = inlined_call_operand.hbm [shape: f32[8,256], index: 3, kind: input, shape index: {}]
  %s4 = inlined_call_operand.hbm [shape: f32[8,256], index: 4, kind: output, shape index: {}]
  %s5 = sld [smem:[#allocation0]]
  $region34: #{tpu_custom_call.1} parent=0
    _
  %s7 = ssub.s32 1, %s5
  %s8 = scalar_select 0, %s7, %s5
  %10 = dma.hbm_to_smem %s0, 16, [#allocation3], [#allocation2]
  %11 = dma.done [#allocation2], 16
  %12 = sfence
  $region1: #{tpu_custom_call.1} parent=0
    #allocation4 [shape = 'u8[8192]{0}', space=vmem, size = 0x2000, scoped, tag = 'input window, operand 1, single buffered']
    #allocation5 [shape = 's32[1]{0}', space=sflag, size = 0x4, scoped, tag = 'scoped memory for tpu_custom_call.1']
    #allocation6 [shape = 's32[1]{0}', space=sflag, size = 0x4, scoped, tag = 'scoped memory for tpu_custom_call.1']
    #allocation7 [shape = 'u8[8192]{0}', space=vmem, size = 0x2000, scoped, tag = 'input window, operand 2, single buffered']
    #allocation8 [shape = 's32[1]{0}', space=sflag, size = 0x4, scoped, tag = 'scoped memory for tpu_custom_call.1']
    #allocation9 [shape = 'u8[8192]{0}', space=vmem, size = 0x2000, scoped, tag = 'input window, operand 3, single buffered']
    #allocation10 [shape = 'u8[8192]{0}', space=vmem, size = 0x2000, scoped, tag = 'output window, operand 0, single buffered']
    %13 = vsyncpa [#allocation5], 0
    %14 = vsyncpa [#allocation8], 0
    %15 = vsyncpa [#allocation6], 0
    // Predicated region
    $region2: #{tpu_custom_call.1} parent=1 // pred_check
      _
    $region3: #{tpu_custom_call.1} parent=1 // pred_check_branch
      %17 = sbr.rel (0) target = $region5
    $region4: #{tpu_custom_call.1} parent=1 // pred_region
      %s19 = ssub.s32 256, 256
      %20 = vsyncadd [#allocation5], %s19
      %s22 = sshll.u32 [#allocation4], 4
      %s23 = int_to_ptr.vmem [resolvable:$true] %s22
      %25 = dma.hbm_to_vmem [thread:$0]  %s1, 256, %s23, [#allocation5]
    $region5: #{tpu_custom_call.1} parent=1 // pred_fallthru
      _
    // Predicated region
    $region6: #{tpu_custom_call.1} parent=1 // pred_check
      _
    $region7: #{tpu_custom_call.1} parent=1 // pred_check_branch
      %27 = sbr.rel (0) target = $region9
    $region8: #{tpu_custom_call.1} parent=1 // pred_region
      %s29 = ssub.s32 256, 256
      %30 = vsyncadd [#allocation8], %s29
      %s32 = sshll.u32 [#allocation7], 4
      %s33 = int_to_ptr.vmem [resolvable:$true] %s32
      %35 = dma.hbm_to_vmem [thread:$0]  %s2, 256, %s33, [#allocation8]
    $region9: #{tpu_custom_call.1} parent=1 // pred_fallthru
      _
    // Predicated region
    $region10: #{tpu_custom_call.1} parent=1 // pred_check
      _
    $region11: #{tpu_custom_call.1} parent=1 // pred_check_branch
      %37 = sbr.rel (0) target = $region13
    $region12: #{tpu_custom_call.1} parent=1 // pred_region
      %s39 = ssub.s32 256, 256
      %40 = vsyncadd [#allocation8], %s39
      %s42 = sshll.u32 [#allocation9], 4
      %s43 = int_to_ptr.vmem [resolvable:$true] %s42
      %45 = dma.hbm_to_vmem [thread:$0]  %s3, 256, %s43, [#allocation8]
    $region13: #{tpu_custom_call.1} parent=1 // pred_fallthru
      _
    // Predicated region
    $region14: #{tpu_custom_call.1} parent=1 // pred_check
      _
    $region15: #{tpu_custom_call.1} parent=1 // pred_check_branch
      %47 = sbr.rel (0) target = $region17
    $region16: #{tpu_custom_call.1} parent=1 // pred_region
      %48 = dma.done [#allocation5], 256
    $region17: #{tpu_custom_call.1} parent=1 // pred_fallthru
      _
    // Predicated region
    $region18: #{tpu_custom_call.1} parent=1 // pred_check
      _
    $region19: #{tpu_custom_call.1} parent=1 // pred_check_branch
      %50 = sbr.rel (0) target = $region21
    $region20: #{tpu_custom_call.1} parent=1 // pred_region
      %51 = dma.done [#allocation8], 256
    $region21: #{tpu_custom_call.1} parent=1 // pred_fallthru
      _
    // Predicated region
    $region22: #{tpu_custom_call.1} parent=1 // pred_check
      _
    $region23: #{tpu_custom_call.1} parent=1 // pred_check_branch
      %53 = sbr.rel (0) target = $region25
    $region24: #{tpu_custom_call.1} parent=1 // pred_region
      %54 = dma.done [#allocation8], 256
    $region25: #{tpu_custom_call.1} parent=1 // pred_fallthru
      _
    %v55 = vld [vmem:[#allocation4] sm:$0xff]
    %v56 = vld [vmem:[#allocation4 + $0x8] sm:$0xff]
    %v57 = vld [vmem:[#allocation7] sm:$0xff]
    %v58 = vld [vmem:[#allocation7 + $0x8] sm:$0xff]
    %s59 = sld [smem:[#allocation3]]
    %v60 = vstv %s59
    %v61 = vmul.f32 %v57, %v60
    %v62 = vmul.f32 %v58, %v60
    %v63 = vadd.f32 %v55, %v61
    %v64 = vadd.f32 %v56, %v62
    %v65 = vld [vmem:[#allocation9] sm:$0xff]
    %v66 = vld [vmem:[#allocation9 + $0x8] sm:$0xff]
    %s67 = sld [smem:[#allocation3 + $0x1]]
    %v68 = vstv %s67
    %v69 = vmul.f32 %v65, %v68
    %v70 = vmul.f32 %v66, %v68
    %v71 = vadd.f32 %v63, %v69
    %v72 = vadd.f32 %v64, %v70
    %73 = vst [vmem:[#allocation10] sm:$0xff] %v71
    %74 = vst [vmem:[#allocation10 + $0x8] sm:$0xff] %v72
    // Predicated region
    $region26: #{tpu_custom_call.1} parent=1 // pred_check
      _
    $region27: #{tpu_custom_call.1} parent=1 // pred_check_branch
      %76 = sbr.rel (0) target = $region29
    $region28: #{tpu_custom_call.1} parent=1 // pred_region
      %s78 = ssub.s32 256, 256
      %79 = vsyncadd [#allocation6], %s78
      %s81 = sshll.u32 [#allocation10], 4
      %s82 = int_to_ptr.vmem [resolvable:$true] %s81
      %84 = dma.vmem_to_hbm [thread:$0]  %s82, 256, %s4, [#allocation6]
    $region29: #{tpu_custom_call.1} parent=1 // pred_fallthru
      _
    // Predicated region
    $region30: #{tpu_custom_call.1} parent=1 // pred_check
      _
    $region31: #{tpu_custom_call.1} parent=1 // pred_check_branch
      %86 = sbr.rel (0) target = $region33
    $region32: #{tpu_custom_call.1} parent=1 // pred_region
      %87 = dma.done [#allocation6], 256
    $region33: #{tpu_custom_call.1} parent=1 // pred_fallthru
      _
    %88 = vsyncpa [#allocation5], 1
    %89 = vsyncpa [#allocation8], 1
    %90 = vsyncpa [#allocation6], 1

</llo_original>
